<compile_context>
chip_gen: v7x
topology: tpu7x:2x2x1
jax: 0.10.0
libtpu: 0.0.40
codegen_flags: <defaults>
</compile_context>

<pallas_src>
import functools

import jax
import jax.numpy as jnp
from jax import lax
from jax.experimental import pallas as pl
from jax.experimental.pallas import tpu as pltpu


_LANES = 128
_SUB = 128   # rows per inner accumulation slice (~30-50 live vregs, no spills)


def _sublane_quantum(dtype):
    """Minimum sublane granularity so a (row_tile, 128) block tiles cleanly."""
    itemsize = jnp.dtype(dtype).itemsize
    return max(8, 8 * (4 // itemsize))   # f32 -> 8, bf16/f16 -> 16, int8 -> 32


def _tpu_defaults():
    """(max_row_tile, tensorcores) tuned per TPU generation."""
    kind = ""
    try:
        kind = jax.devices()[0].device_kind.lower()
    except Exception:
        pass
    if "v7" in kind:                         # 2 TC/chip, 64 MiB VMEM, ~3.2 TB/s HBM
        return 8192, 2
    if "v6" in kind:                         # 1 TC, 128 MiB VMEM, ~1.4 TB/s
        return 8192, 1
    if ("v4" in kind) or ("v5p" in kind):    # megacore: 2 TCs share the grid
        return 4096, 2
    return 4096, 1                           # v5e / unknown: conservative


def _l1_partial_sum_kernel(y_ref, gt_ref, part_ref, *, rows, row_tile, steps, sub):
    """Accumulate per-core partial sums of |y - gt| into the resident
    (1, 8, 128) output block."""
    c = pl.program_id(0)   # core-split axis ("parallel"; both TCs on v7x)
    i = pl.program_id(1)   # streaming reduction axis ("arbitrary")

    @pl.when(i == 0)
    def _():
        part_ref[...] = jnp.zeros_like(part_ref)

    # Valid rows in this tile: == row_tile for full tiles, < row_tile for the
    # last (partial) tile, <= 0 for the phantom clamped step one core may see
    # when tiles don't split evenly across cores.
    valid = rows - (c * steps + i) * row_tile

    def accumulate(masked):
        # Slice-wise accumulation: the (row_tile, 128) intermediate never
        # materializes, so nothing spills through the ld/st slots.
        base_ids = (lax.broadcasted_iota(jnp.int32, (sub, _LANES), 0)
                    if masked else None)

        def body(j, acc):
            r0 = pl.multiple_of(j * sub, sub)
            yv = y_ref[pl.ds(r0, sub), :].astype(jnp.float32)
            gv = gt_ref[pl.ds(r0, sub), :].astype(jnp.float32)
            d = jnp.abs(yv - gv)
            if masked:
                # Rows past `valid` are clipped-DMA garbage (edge block) or a
                # duplicated block (phantom step); select them to exactly 0.
                d = jnp.where(base_ids + r0 < valid, d, 0.0)
            # Pure VPU adds (reduce over whole-vreg groups, no XLU).
            return acc + jnp.sum(d.reshape(sub // 8, 8, _LANES), axis=0)

        acc = lax.fori_loop(0, row_tile // sub, body,
                            jnp.zeros((8, _LANES), jnp.float32))
        part_ref[0] += acc

    # Full tiles stay on the pure vld/sub/abs/add fast path; masking cost is
    # only paid on the (at most one) partial/phantom tile per core.
    @pl.when(valid >= row_tile)
    def _():
        accumulate(masked=False)

    @pl.when(valid < row_tile)
    def _():
        accumulate(masked=True)


def sparse_l1_forward(y, gt, loss_sparsity, *, max_row_tile=None, num_cores=None):
    """Pallas implementation of SparseL1.forward.

    y, gt: arrays of identical shape (e.g. NCHW). loss_sparsity: scalar.
    Returns (loss, loss_sparsity_scaled, loss1) as float32 scalars.
    max_row_tile / num_cores override the generation-tuned defaults (testing).
    """
    assert y.shape == gt.shape
    n = y.size
    assert n > 0

    dflt_tile, dflt_cores = _tpu_defaults()
    row_tile = dflt_tile if max_row_tile is None else int(max_row_tile)
    n_cores = dflt_cores if num_cores is None else int(num_cores)

    q = max(_sublane_quantum(y.dtype), _sublane_quantum(gt.dtype))
    assert row_tile >= 8 and row_tile % q == 0, (row_tile, q)

    yf = jnp.ravel(y)   # contiguous reshape: free, no HBM copy
    gf = jnp.ravel(gt)

    if n < row_tile * _LANES:
        # Small input: pallas_call fixed cost would dominate and XLA's fused
        # reduce is already at roofline -> pure-JAX fallback.
        total = jnp.sum(jnp.abs(yf.astype(jnp.float32) - gf.astype(jnp.float32)))
    else:
        chunk = q * _LANES
        tail = n % chunk
        bulk = n - tail
        rows = bulk // _LANES          # >= row_tile, multiple of q

        # Ragged tail (< q*128 elements): tiny plain-JAX reduction instead of
        # a full-tensor concatenate/pad copy in HBM.
        if tail:
            tail_sum = jnp.sum(jnp.abs(yf[bulk:].astype(jnp.float32) -
                                       gf[bulk:].astype(jnp.float32)))
        else:
            tail_sum = jnp.float32(0.0)

        y2 = (yf[:bulk] if tail else yf).reshape(rows, _LANES)
        g2 = (gf[:bulk] if tail else gf).reshape(rows, _LANES)

        n_tiles = pl.cdiv(rows, row_tile)
        nsplit = n_cores if n_tiles >= n_cores else 1
        steps = pl.cdiv(n_tiles, nsplit)
        clamp = (nsplit * steps != n_tiles)   # phantom last step on one core

        def in_map(c, i):
            t = c * steps + i
            if clamp:
                t = jnp.minimum(t, n_tiles - 1)   # keep DMA in-bounds; kernel masks to 0
            return (t, 0)

        sub = min(_SUB, row_tile)
        assert row_tile % sub == 0

        kernel = functools.partial(
            _l1_partial_sum_kernel,
            rows=rows, row_tile=row_tile, steps=steps, sub=sub)

        itemsz = jnp.dtype(y.dtype).itemsize + jnp.dtype(gt.dtype).itemsize
        tile_bytes = row_tile * _LANES * itemsz       # both inputs, one buffer
        # 2 pipeline buffers per input + ~25% headroom; capped below v7x's
        # 64 MiB physical VMEM, floored at the v5e scoped default.
        vmem_limit = int(min(60 * 2**20,
                             max(int(2 * tile_bytes * 1.25) + 2**20, 16 * 2**20)))

        partials = pl.pallas_call(
            kernel,
            out_shape=jax.ShapeDtypeStruct((nsplit, 8, _LANES), jnp.float32),
            grid_spec=pltpu.PrefetchScalarGridSpec(
                num_scalar_prefetch=0,
                grid=(nsplit, steps),
                in_specs=[
                    # Default double-buffering hides DMA at these tile sizes
                    # (mem-bound); deepen only if xprof shows exposed DMA.
                    pl.BlockSpec((row_tile, _LANES), in_map),
                    pl.BlockSpec((row_tile, _LANES), in_map),
                ],
                out_specs=pl.BlockSpec((1, 8, _LANES), lambda c, i: (c, 0, 0)),
            ),
            compiler_params=pltpu.CompilerParams(
                dimension_semantics=("parallel", "arbitrary"),
                vmem_limit_bytes=vmem_limit),
            cost_estimate=pl.CostEstimate(
                flops=2 * n, transcendentals=0,
                bytes_accessed=rows * _LANES * itemsz),
        )(y2, g2)

        total = jnp.sum(partials) + tail_sum

    # Final scalar combine (a handful of FLOPs) in the wrapper.
    # 1/n computed in Python double to avoid f32 integer rounding for n > 2^24.
    l1 = total * jnp.float32(1.0 / n)                        # mean(|y - gt|)
    sp = jnp.float32(1e-5) * jnp.asarray(loss_sparsity, jnp.float32)
    loss = l1 + sp
    return loss, sp, l1


def _check(y, gt, loss_sparsity, rtol, atol, **kwargs):
    loss, sp, l1 = sparse_l1_forward(y, gt, loss_sparsity, **kwargs)
    jax.block_until_ready((loss, sp, l1))
    ref_l1 = jnp.mean(jnp.abs(y - gt))
    ref_sp = 1e-5 * jnp.asarray(loss_sparsity, jnp.float32)
    ref_loss = ref_l1 + ref_sp
    assert jnp.allclose(l1, ref_l1, rtol=rtol, atol=atol), (l1, ref_l1)
    assert jnp.allclose(sp, ref_sp, rtol=rtol, atol=atol), (sp, ref_sp)
    assert jnp.allclose(loss, ref_loss, rtol=rtol, atol=atol), (loss, ref_loss)


if __name__ == "__main__":
    key = jax.random.PRNGKey(0)
    k1, k2, k3 = jax.random.split(key, 3)

    # Primary small NCHW example consistent with an image-restoration loss
    # (takes the pure-JAX fallback path, by design for tiny losses).
    y = jax.random.normal(k1, (2, 4, 16, 16), dtype=jnp.float32)
    gt = jax.random.normal(k2, (2, 4, 16, 16), dtype=jnp.float32)
    loss_sparsity_in = jnp.abs(jax.random.normal(k3, (), dtype=jnp.float32)) * 100.0
    _check(y, gt, loss_sparsity_in, rtol=1e-5, atol=1e-6)

    # Ragged shape with a forced tiny tile: exercises the Pallas path plus the
    # sub-128 plain-JAX tail (no padding copies).
    k4, k5 = jax.random.split(k3)
    y_r = jax.random.normal(k4, (3, 5, 7, 11), dtype=jnp.float32)
    gt_r = jax.random.normal(k5, (3, 5, 7, 11), dtype=jnp.float32)
    _check(y_r, gt_r, 7.5, rtol=2e-4, atol=1e-6, max_row_tile=8)

    # Forced small tile + 2-way split: exercises the partial-tile masked path
    # and the phantom clamped step (7 tiles over 2 "cores").
    k6, k7 = jax.random.split(k4)
    y_m = jax.random.normal(k6, (4, 8, 100, 128), dtype=jnp.float32)
    gt_m = jax.random.normal(k7, (4, 8, 100, 128), dtype=jnp.float32)
    _check(y_m, gt_m, 0.25, rtol=2e-4, atol=1e-6, max_row_tile=512, num_cores=2)

    # Large enough to take the default generation-tuned Pallas path
    # (8192-row tiles on v6e/v7x, 4096 on v5e) including a partial last tile.
    k8, k9 = jax.random.split(k6)
    y_b = jax.random.normal(k8, (2, 4, 384, 384), dtype=jnp.float32)
    gt_b = jax.random.normal(k9, (2, 4, 384, 384), dtype=jnp.float32)
    _check(y_b, gt_b, 3.0, rtol=2e-4, atol=1e-6)

    print("KERNEL_OK")
</pallas_src>

<mosaic_0001>
module attributes {stable_mosaic.version = 11 : i64} {
  func.func @_l1_partial_sum_kernel(%arg0: i32, %arg1: i32, %arg2: memref<8x128xf32, #tpu.memory_space<vmem>>, %arg3: memref<8x128xf32, #tpu.memory_space<vmem>>, %arg4: memref<1x8x128xf32, #tpu.memory_space<vmem>>) attributes {dimension_semantics = [#tpu.dimension_semantics<parallel>, #tpu.dimension_semantics<arbitrary>], iteration_bounds = array<i64: 1, 1>, scalar_prefetch = 0 : i64, scratch_operands = 0 : i64, tpu.core_type = #tpu.core_type<tc>, window_params = [{transform_indices = @transform_0, window_bounds = array<i64: 8, 128>}, {transform_indices = @transform_1, window_bounds = array<i64: 8, 128>}, {transform_indices = @transform_2, window_bounds = array<i64: 1, 8, 128>}]} {
    %c0_i32 = arith.constant 0 : i32
    %0 = arith.cmpi eq, %arg1, %c0_i32 : i32
    %1 = arith.extui %0 : i1 to i32
    %c0_i32_0 = arith.constant 0 : i32
    %2 = arith.cmpi ne, %1, %c0_i32_0 : i32
    scf.if %2 {
      %cst = arith.constant 0.000000e+00 : f32
      %13 = vector.broadcast %cst : f32 to vector<1x8x128xf32>
      %c0 = arith.constant 0 : index
      %c0_6 = arith.constant 0 : index
      %c0_7 = arith.constant 0 : index
      %14 = vector.load %arg4[%c0, %c0_6, %c0_7] : memref<1x8x128xf32, #tpu.memory_space<vmem>>, vector<1x8x128xf32>
      tpu.vector_store %arg4[%c0, %c0_6, %c0_7], %13 {strides = array<i32>} : memref<1x8x128xf32, #tpu.memory_space<vmem>>, vector<1x8x128xf32>,
    } else {
    }
    %c1_i32 = arith.constant 1 : i32
    %3 = arith.muli %arg0, %c1_i32 : i32
    %4 = arith.addi %3, %arg1 : i32
    %c8_i32 = arith.constant 8 : i32
    %5 = arith.muli %4, %c8_i32 : i32
    %c8_i32_1 = arith.constant 8 : i32
    %6 = arith.subi %c8_i32_1, %5 : i32
    %c8_i32_2 = arith.constant 8 : i32
    %7 = arith.cmpi sge, %6, %c8_i32_2 : i32
    %8 = arith.extui %7 : i1 to i32
    %c0_i32_3 = arith.constant 0 : i32
    %9 = arith.cmpi ne, %8, %c0_i32_3 : i32
    scf.if %9 {
      %cst = arith.constant 0.000000e+00 : f32
      %13 = vector.broadcast %cst : f32 to vector<8x128xf32>
      %c0_i32_6 = arith.constant 0 : i32
      %c8_i32_7 = arith.constant 8 : i32
      %14 = arith.muli %c0_i32_6, %c8_i32_7 : i32
      %15 = tpu.assume_multiple %14, 8 : i32
      %16 = arith.index_cast %15 : i32 to index
      %c0 = arith.constant 0 : index
      %17 = vector.load %arg2[%16, %c0] : memref<8x128xf32, #tpu.memory_space<vmem>>, vector<8x128xf32>
      %18 = arith.index_cast %15 : i32 to index
      %c0_8 = arith.constant 0 : index
      %19 = vector.load %arg3[%18, %c0_8] : memref<8x128xf32, #tpu.memory_space<vmem>>, vector<8x128xf32>
      %20 = arith.subf %17, %19 : vector<8x128xf32>
      %21 = math.absf %20 : vector<8x128xf32>
      %22 = vector.shape_cast %21 : vector<8x128xf32> to vector<1x8x128xf32>
      %cst_9 = arith.constant dense<0.000000e+00> : vector<8x128xf32>
      %23 = vector.multi_reduction <add>, %22, %cst_9 [0] : vector<1x8x128xf32> to vector<8x128xf32>
      %24 = arith.addf %13, %23 : vector<8x128xf32>
      %c1_i32_10 = arith.constant 1 : i32
      %c0_11 = arith.constant 0 : index
      %c0_12 = arith.constant 0 : index
      %c0_13 = arith.constant 0 : index
      %25 = vector.load %arg4[%c0_11, %c0_12, %c0_13] : memref<1x8x128xf32, #tpu.memory_space<vmem>>, vector<1x8x128xf32>
      %26 = vector.shape_cast %25 : vector<1x8x128xf32> to vector<8x128xf32>
      %27 = arith.addf %26, %24 : vector<8x128xf32>
      %c0_14 = arith.constant 0 : index
      %c0_15 = arith.constant 0 : index
      %c0_16 = arith.constant 0 : index
      %28 = vector.load %arg4[%c0_14, %c0_15, %c0_16] : memref<1x8x128xf32, #tpu.memory_space<vmem>>, vector<1x8x128xf32>
      %29 = vector.shape_cast %28 : vector<1x8x128xf32> to vector<8x128xf32>
      %30 = vector.shape_cast %27 : vector<8x128xf32> to vector<1x8x128xf32>
      tpu.vector_store %arg4[%c0_14, %c0_15, %c0_16], %30 {strides = array<i32>} : memref<1x8x128xf32, #tpu.memory_space<vmem>>, vector<1x8x128xf32>,
    } else {
    }
    %c8_i32_4 = arith.constant 8 : i32
    %10 = arith.cmpi slt, %6, %c8_i32_4 : i32
    %11 = arith.extui %10 : i1 to i32
    %c0_i32_5 = arith.constant 0 : i32
    %12 = arith.cmpi ne, %11, %c0_i32_5 : i32
    scf.if %12 {
      %13 = tpu.iota {dimensions = array<i32: 0>} : vector<8x128xi32>
      %cst = arith.constant 0.000000e+00 : f32
      %14 = vector.broadcast %cst : f32 to vector<8x128xf32>
      %c0_i32_6 = arith.constant 0 : i32
      %c8_i32_7 = arith.constant 8 : i32
      %15 = arith.muli %c0_i32_6, %c8_i32_7 : i32
      %16 = tpu.assume_multiple %15, 8 : i32
      %17 = arith.index_cast %16 : i32 to index
      %c0 = arith.constant 0 : index
      %18 = vector.load %arg2[%17, %c0] : memref<8x128xf32, #tpu.memory_space<vmem>>, vector<8x128xf32>
      %19 = arith.index_cast %16 : i32 to index
      %c0_8 = arith.constant 0 : index
      %20 = vector.load %arg3[%19, %c0_8] : memref<8x128xf32, #tpu.memory_space<vmem>>, vector<8x128xf32>
      %21 = arith.subf %18, %20 : vector<8x128xf32>
      %22 = math.absf %21 : vector<8x128xf32>
      %23 = vector.broadcast %16 : i32 to vector<8x128xi32>
      %24 = arith.addi %13, %23 : vector<8x128xi32>
      %25 = vector.broadcast %6 : i32 to vector<8x128xi32>
      %26 = arith.cmpi slt, %24, %25 : vector<8x128xi32>
      %cst_9 = arith.constant 0.000000e+00 : f32
      %27 = vector.broadcast %cst_9 : f32 to vector<8x128xf32>
      %28 = arith.select %26, %22, %27 : vector<8x128xi1>, vector<8x128xf32>
      %29 = vector.shape_cast %28 : vector<8x128xf32> to vector<1x8x128xf32>
      %cst_10 = arith.constant dense<0.000000e+00> : vector<8x128xf32>
      %30 = vector.multi_reduction <add>, %29, %cst_10 [0] : vector<1x8x128xf32> to vector<8x128xf32>
      %31 = arith.addf %14, %30 : vector<8x128xf32>
      %c1_i32_11 = arith.constant 1 : i32
      %c0_12 = arith.constant 0 : index
      %c0_13 = arith.constant 0 : index
      %c0_14 = arith.constant 0 : index
      %32 = vector.load %arg4[%c0_12, %c0_13, %c0_14] : memref<1x8x128xf32, #tpu.memory_space<vmem>>, vector<1x8x128xf32>
      %33 = vector.shape_cast %32 : vector<1x8x128xf32> to vector<8x128xf32>
      %34 = arith.addf %33, %31 : vector<8x128xf32>
      %c0_15 = arith.constant 0 : index
      %c0_16 = arith.constant 0 : index
      %c0_17 = arith.constant 0 : index
      %35 = vector.load %arg4[%c0_15, %c0_16, %c0_17] : memref<1x8x128xf32, #tpu.memory_space<vmem>>, vector<1x8x128xf32>
      %36 = vector.shape_cast %35 : vector<1x8x128xf32> to vector<8x128xf32>
      %37 = vector.shape_cast %34 : vector<8x128xf32> to vector<1x8x128xf32>
      tpu.vector_store %arg4[%c0_15, %c0_16, %c0_17], %37 {strides = array<i32>} : memref<1x8x128xf32, #tpu.memory_space<vmem>>, vector<1x8x128xf32>,
    } else {
    }
    return
  }
  func.func @transform_0(%arg0: i32, %arg1: i32) -> (i32, i32) {
    %c1_i32 = arith.constant 1 : i32
    %0 = arith.muli %arg0, %c1_i32 : i32
    %1 = arith.addi %0, %arg1 : i32
    %c0_i32 = arith.constant 0 : i32
    %c0_i32_0 = arith.constant 0 : i32
    return %1, %c0_i32 : i32, i32
  }
  func.func @transform_1(%arg0: i32, %arg1: i32) -> (i32, i32) {
    %c1_i32 = arith.constant 1 : i32
    %0 = arith.muli %arg0, %c1_i32 : i32
    %1 = arith.addi %0, %arg1 : i32
    %c0_i32 = arith.constant 0 : i32
    %c0_i32_0 = arith.constant 0 : i32
    return %1, %c0_i32 : i32, i32
  }
  func.func @transform_2(%arg0: i32, %arg1: i32) -> (i32, i32, i32) {
    %c0_i32 = arith.constant 0 : i32
    %c0_i32_0 = arith.constant 0 : i32
    %c0_i32_1 = arith.constant 0 : i32
    return %arg0, %c0_i32, %c0_i32_0 : i32, i32, i32
  }
}

</mosaic_0001>

<llo_original>
// kernel: tpu_custom_call.1
$region0: #{tpu_custom_call.1}
  #allocation0 [shape = 'u32[]', space=smem, size = 0x4, offset = 0x4, fixed_abs, tag = 'smem constant byte address 0x4 - core index']
  #allocation1 [shape = 'u32[144,128]{1,0:T(1,128)}', space=vmem, size = 0x12000, scoped, tag = 'internal scratch']
  %s0 = inlined_call_operand.hbm [shape: f32[8,128], index: 0, kind: input, shape index: {}]
  %s1 = inlined_call_operand.hbm [shape: f32[8,128], index: 1, kind: input, shape index: {}]
  %s2 = inlined_call_operand.hbm [shape: f32[1,8,128], index: 2, kind: output, shape index: {}]
  %s3 = sld [smem:[#allocation0]]
  $region38: #{tpu_custom_call.1} parent=0
    _
  %s5 = ssub.s32 1, %s3
  %s6 = scalar_select 0, %s5, %s3
  $region1: #{tpu_custom_call.1} parent=0
    #allocation2 [shape = 'u8[4096]{0}', space=vmem, size = 0x1000, scoped, tag = 'input window, operand 0, single buffered']
    #allocation3 [shape = 's32[1]{0}', space=sflag, size = 0x4, scoped, tag = 'scoped memory for tpu_custom_call.1']
    #allocation4 [shape = 's32[1]{0}', space=sflag, size = 0x4, scoped, tag = 'scoped memory for tpu_custom_call.1']
    #allocation5 [shape = 'u8[4096]{0}', space=vmem, size = 0x1000, scoped, tag = 'input window, operand 1, single buffered']
    #allocation6 [shape = 's32[1]{0}', space=sflag, size = 0x4, scoped, tag = 'scoped memory for tpu_custom_call.1']
    #allocation7 [shape = 'u8[4096]{0}', space=vmem, size = 0x1000, scoped, tag = 'output window, operand 0, single buffered']
    %7 = vsyncpa [#allocation3], 0
    %8 = vsyncpa [#allocation6], 0
    %9 = vsyncpa [#allocation4], 0
    // Predicated region
    $region2: #{tpu_custom_call.1} parent=1 // pred_check
      _
    $region3: #{tpu_custom_call.1} parent=1 // pred_check_branch
      %11 = sbr.rel (0) target = $region5
    $region4: #{tpu_custom_call.1} parent=1 // pred_region
      %s12 = sadd.s32 0, 0
      %s14 = ssub.s32 128, 128
      %15 = vsyncadd [#allocation3], %s14
      %s16 = smul.addr %s12, 128
      %s17 = scalar_lea.hbm %s0, %s16
      %s19 = sshll.u32 [#allocation2], 4
      %s20 = int_to_ptr.vmem [resolvable:$true] %s19
      %22 = dma.hbm_to_vmem [thread:$0]  %s17, 128, %s20, [#allocation3]
    $region5: #{tpu_custom_call.1} parent=1 // pred_fallthru
      _
    // Predicated region
    $region6: #{tpu_custom_call.1} parent=1 // pred_check
      _
    $region7: #{tpu_custom_call.1} parent=1 // pred_check_branch
      %24 = sbr.rel (0) target = $region9
    $region8: #{tpu_custom_call.1} parent=1 // pred_region
      %s25 = sadd.s32 0, 0
      %s27 = ssub.s32 128, 128
      %28 = vsyncadd [#allocation6], %s27
      %s29 = smul.addr %s25, 128
      %s30 = scalar_lea.hbm %s1, %s29
      %s32 = sshll.u32 [#allocation5], 4
      %s33 = int_to_ptr.vmem [resolvable:$true] %s32
      %35 = dma.hbm_to_vmem [thread:$0]  %s30, 128, %s33, [#allocation6]
    $region9: #{tpu_custom_call.1} parent=1 // pred_fallthru
      _
    // Predicated region
    $region10: #{tpu_custom_call.1} parent=1 // pred_check
      _
    $region11: #{tpu_custom_call.1} parent=1 // pred_check_branch
      %37 = sbr.rel (0) target = $region13
    $region12: #{tpu_custom_call.1} parent=1 // pred_region
      %38 = dma.done [#allocation3], 128
    $region13: #{tpu_custom_call.1} parent=1 // pred_fallthru
      _
    // Predicated region
    $region14: #{tpu_custom_call.1} parent=1 // pred_check
      _
    $region15: #{tpu_custom_call.1} parent=1 // pred_check_branch
      %40 = sbr.rel (0) target = $region17
    $region16: #{tpu_custom_call.1} parent=1 // pred_region
      %41 = dma.done [#allocation6], 128
    $region17: #{tpu_custom_call.1} parent=1 // pred_fallthru
      _
    %s42 = sadd.s32 0, 0
    %s43 = sadd.s32 0, 0
    %p44 = scmp.eq.s32.totalorder 0, 0
    // Predicated region
    $region18: #{tpu_custom_call.1} parent=1 // pred_check
      %p45 = pneg %p44
    $region19: #{tpu_custom_call.1} parent=1 // pred_check_branch
      %47 = sbr.rel (%p45) target = $region21
    $region20: #{tpu_custom_call.1} parent=1 // pred_region
      %48 = vst [vmem:[#allocation7] sm:$0xff] 0.0
    $region21: #{tpu_custom_call.1} parent=1 // pred_fallthru
      _
    %s49 = sadd.s32 0, 0
    %s50 = smul.u32 %s49, 8
    %s51 = ssub.s32 8, %s50
    %p52 = scmp.ge.s32.totalorder %s51, 8
    // Predicated region
    $region22: #{tpu_custom_call.1} parent=1 // pred_check
      %p53 = pneg %p52
    $region23: #{tpu_custom_call.1} parent=1 // pred_check_branch
      %55 = sbr.rel (%p53) target = $region25
    $region24: #{tpu_custom_call.1} parent=1 // pred_region
      %v56 = vld [vmem:[#allocation2] sm:$0xff]
      %v57 = vld [vmem:[#allocation5] sm:$0xff]
      %v58 = vsub.f32 %v56, %v57
      %v59 = vand.u32 2147483647, %v58
      %v60 = vadd.f32 %v59, 0.0
      %v61 = vadd.f32 %v60, 0.0
      %v62 = vld [vmem:[#allocation7] sm:$0xff]
      %v63 = vadd.f32 %v62, %v61
      %64 = vst [vmem:[#allocation7] sm:$0xff] %v63
    $region25: #{tpu_custom_call.1} parent=1 // pred_fallthru
      _
    %p65 = scmp.lt.s32.totalorder %s51, 8
    // Predicated region
    $region26: #{tpu_custom_call.1} parent=1 // pred_check
      %p66 = pneg %p65
    $region27: #{tpu_custom_call.1} parent=1 // pred_check_branch
      %68 = sbr.rel (%p66) target = $region29
    $region28: #{tpu_custom_call.1} parent=1 // pred_region
      %v69 = vlaneseq
      %v70 = vshrl.u32 %v69, 7
      %v71 = vld [vmem:[#allocation2] sm:$0xff]
      %v72 = vld [vmem:[#allocation5] sm:$0xff]
      %v73 = vsub.f32 %v71, %v72
      %v74 = vand.u32 2147483647, %v73
      %v75 = vstv 0
      %v76 = vadd.s32 %v70, %v75
      %v77 = vstv %s51
      %vm78 = vcmp.lt.s32.totalorder %v76, %v77
      %v79 = vsel %vm78, %v74, 0.0
      %v80 = vadd.f32 %v79, 0.0
      %v81 = vadd.f32 %v80, 0.0
      %v82 = vld [vmem:[#allocation7] sm:$0xff]
      %v83 = vadd.f32 %v82, %v81
      %84 = vst [vmem:[#allocation7] sm:$0xff] %v83
    $region29: #{tpu_custom_call.1} parent=1 // pred_fallthru
      _
    // Predicated region
    $region30: #{tpu_custom_call.1} parent=1 // pred_check
      _
    $region31: #{tpu_custom_call.1} parent=1 // pred_check_branch
      %86 = sbr.rel (0) target = $region33
    $region32: #{tpu_custom_call.1} parent=1 // pred_region
      %s88 = ssub.s32 128, 128
      %89 = vsyncadd [#allocation4], %s88
      %s91 = sshll.u32 [#allocation7], 4
      %s92 = int_to_ptr.vmem [resolvable:$true] %s91
      %94 = dma.vmem_to_hbm [thread:$0]  %s92, 128, %s2, [#allocation4]
    $region33: #{tpu_custom_call.1} parent=1 // pred_fallthru
      _
    // Predicated region
    $region34: #{tpu_custom_call.1} parent=1 // pred_check
      _
    $region35: #{tpu_custom_call.1} parent=1 // pred_check_branch
      %96 = sbr.rel (0) target = $region37
    $region36: #{tpu_custom_call.1} parent=1 // pred_region
      %97 = dma.done [#allocation4], 128
    $region37: #{tpu_custom_call.1} parent=1 // pred_fallthru
      _
    %98 = vsyncpa [#allocation3], 1
    %99 = vsyncpa [#allocation6], 1
    %100 = vsyncpa [#allocation4], 1

</llo_original>
